<compile_context>
chip_gen: v5e
topology: v5e:2x2
jax: 0.10.0
libtpu: 0.0.40
codegen_flags: <defaults>
</compile_context>

<pallas_src>
import functools

import jax
import jax.numpy as jnp
from jax.experimental import pallas as pl
from jax.experimental.pallas import tpu as pltpu


def _round_up(n, m):
    return ((n + m - 1) // m) * m


# ---------------------------------------------------------------------------
# Pallas kernel: feature extractor + bidirectional LSTM (seq_len == 1) +
# classifier, all in VMEM for one batch tile per grid step.
# ---------------------------------------------------------------------------
def audio_lstm_kernel(*refs, hidden_dim, num_layers):
    f32 = jnp.float32
    bf16 = jnp.bfloat16
    H = hidden_dim

    x_ref, wfe_ref, fes_ref, feb_ref = refs[:4]
    layer_refs = refs[4:4 + 2 * num_layers]
    wc_ref, bc_ref, out_ref = refs[4 + 2 * num_layers:]

    def mm(a, w_ref):
        # bf16 MXU inputs, f32 accumulation (weights are stored bf16 host-side).
        return jnp.dot(a.astype(bf16), w_ref[...], preferred_element_type=f32)

    def sigmoid(v):
        return 1.0 / (1.0 + jnp.exp(-v))

    # feature_extractor: Linear -> BatchNorm1d(eval: scale/shift) -> ReLU -> Dropout(id)
    feat = jnp.maximum(mm(x_ref[...], wfe_ref) * fes_ref[...] + feb_ref[...], 0.0)

    # Bidirectional LSTM over a length-1 sequence with zero initial state.
    # Fused per-layer gate columns: [ i_fwd | i_bwd | g_fwd | g_bwd | o_fwd | o_bwd ]
    # (each block H wide -> 128-lane aligned slices for H=64). The forget gate
    # is omitted because f * c0 == 0; W_hh never contributes because h0 == 0;
    # b_hh is pre-added into the bias.
    y = feat
    for l in range(num_layers):
        w_ref, b_ref = layer_refs[2 * l], layer_refs[2 * l + 1]
        gates = mm(y, w_ref) + b_ref[...]                 # [tile, 6H] f32
        i = sigmoid(gates[:, 0:2 * H])                    # [i_fwd | i_bwd]
        g = jnp.tanh(gates[:, 2 * H:4 * H])               # [g_fwd | g_bwd]
        o = sigmoid(gates[:, 4 * H:6 * H])                # [o_fwd | o_bwd]
        y = o * jnp.tanh(i * g)                           # [h_fwd | h_bwd]
        # inter-layer dropout is identity in eval mode.

    # classifier (columns zero-padded to a lane-dense width; sliced in wrapper)
    out = mm(y, wc_ref) + bc_ref[...]
    out_ref[...] = out.astype(out_ref.dtype)


def audio_lstm_forward(x, kp, *, batch_tile=256):
    """x: [B, input_dim] float32.  kp: dict from prepare_kernel_params."""
    f32 = jnp.float32
    B, D = x.shape
    H = int(kp["hidden_dim"])
    num_classes = int(kp["num_classes"])
    num_layers = len(kp["layers"])
    F = kp["w_fe"].shape[1]
    c_pad = kp["wc"].shape[1]

    # Big batch tiles keep the MXU rows busy; keep >= 2 grid steps whenever the
    # batch allows so the "parallel" batch axis can shard across v7x's two TCs.
    tile = max(8, min(batch_tile, _round_up(max(B // 2, 1), 8)))
    Bp = _round_up(B, tile)
    if Bp != B:
        x = jnp.pad(x, ((0, Bp - B), (0, 0)))   # zero rows, sliced off below
    grid = Bp // tile

    weights = [kp["w_fe"], kp["fe_scale"], kp["fe_shift"]]
    for w, b in kp["layers"]:
        weights += [w, b]
    weights += [kp["wc"], kp["bc"]]

    in_specs = [pl.BlockSpec((tile, D), lambda i: (i, 0))]
    # Weights/biases are whole-array blocks with a constant index_map, so they
    # stay resident in VMEM across grid steps.
    # TODO(synk): pipeline_mode=pl.Buffered(1) would drop their redundant second
    # pipeline buffer; left at the default to stay conservative.
    in_specs += [pl.BlockSpec(w.shape, lambda i: (0, 0)) for w in weights]
    out_spec = pl.BlockSpec((tile, c_pad), lambda i: (i, 0))

    # Advisory cost estimate so XLA schedules the custom call sensibly.
    flops = 2 * Bp * (D * F
                      + sum(int(w.shape[0]) * int(w.shape[1])
                            for w, _ in kp["layers"])
                      + 2 * H * c_pad)
    transcendentals = Bp * num_layers * 8 * H
    bytes_accessed = (Bp * D * 4 + Bp * c_pad * 4
                      + sum(int(w.size) * w.dtype.itemsize for w in weights))

    kernel = functools.partial(audio_lstm_kernel, hidden_dim=H,
                               num_layers=num_layers)
    out = pl.pallas_call(
        kernel,
        out_shape=jax.ShapeDtypeStruct((Bp, c_pad), f32),
        grid_spec=pltpu.PrefetchScalarGridSpec(
            num_scalar_prefetch=0,
            grid=(grid,),
            in_specs=in_specs,
            out_specs=out_spec,
        ),
        compiler_params=pltpu.CompilerParams(
            dimension_semantics=("parallel",)),
        cost_estimate=pl.CostEstimate(
            flops=int(flops),
            transcendentals=int(transcendentals),
            bytes_accessed=int(bytes_accessed)),
    )(x, *weights)
    return out[:B, :num_classes]


# ---------------------------------------------------------------------------
# Deterministic PyTorch-layout parameters + host-side re-layout for the kernel.
# ---------------------------------------------------------------------------
def make_params(key, input_dim, hidden_dim=64, num_layers=2, num_classes=1):
    """Deterministic parameters with PyTorch nn.Module layouts/initializers."""
    H = hidden_dim
    keys = iter(jax.random.split(key, 8 + 8 * num_layers))

    def uni(shape, bound):
        return jax.random.uniform(next(keys), shape, jnp.float32, -bound, bound)

    p = {}
    # feature_extractor: Linear(input_dim, 128) + BatchNorm1d(128)
    lb = input_dim ** -0.5
    p["fe_w"] = uni((128, input_dim), lb)          # nn.Linear layout: [out, in]
    p["fe_b"] = uni((128,), lb)
    p["bn_gamma"] = 1.0 + 0.1 * jax.random.normal(next(keys), (128,), jnp.float32)
    p["bn_beta"] = 0.1 * jax.random.normal(next(keys), (128,), jnp.float32)
    p["bn_mean"] = 0.1 * jax.random.normal(next(keys), (128,), jnp.float32)
    p["bn_var"] = 1.0 + 0.2 * jax.random.uniform(next(keys), (128,), jnp.float32)

    # nn.LSTM(128, H, num_layers, bidirectional=True); gate row order [i|f|g|o].
    p["lstm"] = []
    lb = H ** -0.5
    in_size = 128
    for _ in range(num_layers):
        layer = {}
        for d in ("fwd", "bwd"):
            layer[d] = {
                "w_ih": uni((4 * H, in_size), lb),
                "w_hh": uni((4 * H, H), lb),
                "b_ih": uni((4 * H,), lb),
                "b_hh": uni((4 * H,), lb),
            }
        p["lstm"].append(layer)
        in_size = 2 * H

    # classifier: Linear(2H, num_classes)
    lb = (2 * H) ** -0.5
    p["cls_w"] = uni((num_classes, 2 * H), lb)
    p["cls_b"] = uni((num_classes,), lb)
    return p


def prepare_kernel_params(p, *, eps=1e-5):
    """Re-layout PyTorch-style params for the kernel: transpose to [in, out],
    fuse the fwd/bwd gate weights per LSTM layer (dropping the unused forget
    gate, pre-adding b_hh), keep BN as an f32 scale/shift, cast matmul weights
    to bf16, and zero-pad the classifier to a lane-dense (x128) width."""
    f32, bf16 = jnp.float32, jnp.bfloat16
    H = p["lstm"][0]["fwd"]["w_hh"].shape[1]
    num_classes = p["cls_w"].shape[0]

    scale = p["bn_gamma"] / jnp.sqrt(p["bn_var"] + eps)
    shift = p["bn_beta"] - p["bn_mean"] * scale
    kp = {
        "w_fe": p["fe_w"].T.astype(bf16),                              # [in, 128]
        "fe_scale": scale[None, :].astype(f32),                        # [1, 128]
        "fe_shift": (p["fe_b"] * scale + shift)[None, :].astype(f32),  # [1, 128]
        "hidden_dim": int(H),
        "num_classes": int(num_classes),
    }

    def fuse(layer):
        # columns: [ i_fwd | i_bwd | g_fwd | g_bwd | o_fwd | o_bwd ]
        def wg(d, g):
            return layer[d]["w_ih"][g * H:(g + 1) * H, :].T            # [in, H]

        def bg(d, g):
            b = layer[d]["b_ih"] + layer[d]["b_hh"]                    # h0 == 0
            return b[g * H:(g + 1) * H]

        order = [("fwd", 0), ("bwd", 0), ("fwd", 2), ("bwd", 2), ("fwd", 3), ("bwd", 3)]
        W = jnp.concatenate([wg(d, g) for d, g in order], axis=1).astype(bf16)
        b = jnp.concatenate([bg(d, g) for d, g in order])[None, :].astype(f32)
        return W, b

    kp["layers"] = [fuse(layer) for layer in p["lstm"]]

    c_pad = _round_up(max(num_classes, 1), 128)
    wc = jnp.zeros((2 * H, c_pad), f32).at[:, :num_classes].set(p["cls_w"].T)
    bc = jnp.zeros((1, c_pad), f32).at[:, :num_classes].set(p["cls_b"][None, :])
    kp["wc"] = wc.astype(bf16)
    kp["bc"] = bc
    return kp


def reference_forward(x, p, *, eps=1e-5, dot_dtype=jnp.bfloat16):
    """Plain-JAX reference of the PyTorch eval-mode forward (same matmul
    precision as the kernel: bf16 inputs, f32 accumulation)."""
    f32 = jnp.float32
    H = p["lstm"][0]["fwd"]["w_hh"].shape[1]

    def dot(a, b):
        return jnp.dot(a.astype(dot_dtype), b.astype(dot_dtype),
                       preferred_element_type=f32)

    def sigmoid(v):
        return 1.0 / (1.0 + jnp.exp(-v))

    # feature_extractor (eval): Linear -> BatchNorm1d(running stats) -> ReLU -> Dropout(id)
    h = dot(x, p["fe_w"].T) + p["fe_b"]
    h = (h - p["bn_mean"]) / jnp.sqrt(p["bn_var"] + eps) * p["bn_gamma"] + p["bn_beta"]
    feat = jnp.maximum(h, 0.0)

    # unsqueeze(1): sequence of length 1; LSTM initial h/c default to zero.
    def cell(xt, lp):
        h0 = jnp.zeros((xt.shape[0], H), f32)
        c0 = jnp.zeros((xt.shape[0], H), f32)
        gates = dot(xt, lp["w_ih"].T) + dot(h0, lp["w_hh"].T) + lp["b_ih"] + lp["b_hh"]
        i, f, g, o = jnp.split(gates, 4, axis=-1)
        c1 = sigmoid(f) * c0 + sigmoid(i) * jnp.tanh(g)
        return sigmoid(o) * jnp.tanh(c1)

    seq = feat
    for layer in p["lstm"]:
        h_f = cell(seq, layer["fwd"])                 # forward direction, t = 0
        h_b = cell(seq, layer["bwd"])                 # backward direction, t = 0
        seq = jnp.concatenate([h_f, h_b], axis=-1)    # inter-layer dropout = id (eval)

    # classifier on x[:, -1, :] (the only timestep)
    return dot(seq, p["cls_w"].T) + p["cls_b"]


if __name__ == "__main__":
    key = jax.random.PRNGKey(0)
    k_x, k_p = jax.random.split(key)

    batch, input_dim, hidden_dim, num_classes = 32, 40, 64, 1
    x = jax.random.normal(k_x, (batch, input_dim), jnp.float32)
    raw = make_params(k_p, input_dim, hidden_dim=hidden_dim,
                      num_layers=2, num_classes=num_classes)
    kparams = prepare_kernel_params(raw)

    out = audio_lstm_forward(x, kparams, batch_tile=256)
    out = jax.block_until_ready(out)

    ref = reference_forward(x, raw)
    assert out.shape == (batch, num_classes)
    max_err = float(jnp.max(jnp.abs(out - ref)))
    assert jnp.allclose(out, ref, atol=2e-3, rtol=2e-3), (
        f"mismatch vs reference, max abs err {max_err:.3e}")

    print("KERNEL_OK")
</pallas_src>

<mosaic_0001>
module attributes {stable_mosaic.version = 11 : i64} {
  func.func @audio_lstm_kernel(%arg0: i32, %arg1: memref<16x40xf32, #tpu.memory_space<vmem>>, %arg2: memref<40x128xbf16, #tpu.memory_space<vmem>>, %arg3: memref<1x128xf32, #tpu.memory_space<vmem>>, %arg4: memref<1x128xf32, #tpu.memory_space<vmem>>, %arg5: memref<128x384xbf16, #tpu.memory_space<vmem>>, %arg6: memref<1x384xf32, #tpu.memory_space<vmem>>, %arg7: memref<128x384xbf16, #tpu.memory_space<vmem>>, %arg8: memref<1x384xf32, #tpu.memory_space<vmem>>, %arg9: memref<128x128xbf16, #tpu.memory_space<vmem>>, %arg10: memref<1x128xf32, #tpu.memory_space<vmem>>, %arg11: memref<16x128xf32, #tpu.memory_space<vmem>>) attributes {dimension_semantics = [#tpu.dimension_semantics<parallel>], iteration_bounds = array<i64: 2>, scalar_prefetch = 0 : i64, scratch_operands = 0 : i64, tpu.core_type = #tpu.core_type<tc>, window_params = [{transform_indices = @transform_0, window_bounds = array<i64: 16, 40>}, {pipeline_mode = #tpu.pipeline_mode<synchronous>, transform_indices = @transform_1, window_bounds = array<i64: 40, 128>}, {pipeline_mode = #tpu.pipeline_mode<synchronous>, transform_indices = @transform_2, window_bounds = array<i64: 1, 128>}, {pipeline_mode = #tpu.pipeline_mode<synchronous>, transform_indices = @transform_3, window_bounds = array<i64: 1, 128>}, {pipeline_mode = #tpu.pipeline_mode<synchronous>, transform_indices = @transform_4, window_bounds = array<i64: 128, 384>}, {pipeline_mode = #tpu.pipeline_mode<synchronous>, transform_indices = @transform_5, window_bounds = array<i64: 1, 384>}, {pipeline_mode = #tpu.pipeline_mode<synchronous>, transform_indices = @transform_6, window_bounds = array<i64: 128, 384>}, {pipeline_mode = #tpu.pipeline_mode<synchronous>, transform_indices = @transform_7, window_bounds = array<i64: 1, 384>}, {pipeline_mode = #tpu.pipeline_mode<synchronous>, transform_indices = @transform_8, window_bounds = array<i64: 128, 128>}, {pipeline_mode = #tpu.pipeline_mode<synchronous>, transform_indices = @transform_9, window_bounds = array<i64: 1, 128>}, {transform_indices = @transform_10, window_bounds = array<i64: 16, 128>}]} {
    %c0 = arith.constant 0 : index
    %c0_0 = arith.constant 0 : index
    %0 = vector.load %arg1[%c0, %c0_0] : memref<16x40xf32, #tpu.memory_space<vmem>>, vector<16x40xf32>
    %1 = arith.truncf %0 : vector<16x40xf32> to vector<16x40xbf16>
    %c0_1 = arith.constant 0 : index
    %c0_2 = arith.constant 0 : index
    %2 = vector.load %arg2[%c0_1, %c0_2] : memref<40x128xbf16, #tpu.memory_space<vmem>>, vector<40x128xbf16>
    %cst = arith.constant dense<0.000000e+00> : vector<16x128xf32>
    %3 = tpu.matmul %1, %2, %cst {dimension_numbers = #tpu.dot_dimension_numbers<[1], [0], [0], [1], [0, 0, 1, 1], [], []>} : vector<16x40xbf16>, vector<40x128xbf16>, vector<16x128xf32> -> vector<16x128xf32>
    %c0_3 = arith.constant 0 : index
    %c0_4 = arith.constant 0 : index
    %4 = vector.load %arg3[%c0_3, %c0_4] : memref<1x128xf32, #tpu.memory_space<vmem>>, vector<1x128xf32>
    %5 = vector.broadcast %4 : vector<1x128xf32> to vector<16x128xf32>
    %6 = arith.mulf %3, %5 : vector<16x128xf32>
    %c0_5 = arith.constant 0 : index
    %c0_6 = arith.constant 0 : index
    %7 = vector.load %arg4[%c0_5, %c0_6] : memref<1x128xf32, #tpu.memory_space<vmem>>, vector<1x128xf32>
    %8 = vector.broadcast %7 : vector<1x128xf32> to vector<16x128xf32>
    %9 = arith.addf %6, %8 : vector<16x128xf32>
    %cst_7 = arith.constant 0.000000e+00 : f32
    %10 = vector.broadcast %cst_7 : f32 to vector<16x128xf32>
    %11 = arith.maximumf %9, %10 : vector<16x128xf32>
    %12 = arith.truncf %11 : vector<16x128xf32> to vector<16x128xbf16>
    %c0_8 = arith.constant 0 : index
    %c0_9 = arith.constant 0 : index
    %13 = vector.load %arg5[%c0_8, %c0_9] : memref<128x384xbf16, #tpu.memory_space<vmem>>, vector<128x384xbf16>
    %cst_10 = arith.constant dense<0.000000e+00> : vector<16x384xf32>
    %14 = tpu.matmul %12, %13, %cst_10 {dimension_numbers = #tpu.dot_dimension_numbers<[1], [0], [0], [1], [0, 0, 1, 1], [], []>} : vector<16x128xbf16>, vector<128x384xbf16>, vector<16x384xf32> -> vector<16x384xf32>
    %c0_11 = arith.constant 0 : index
    %c0_12 = arith.constant 0 : index
    %15 = vector.load %arg6[%c0_11, %c0_12] : memref<1x384xf32, #tpu.memory_space<vmem>>, vector<1x384xf32>
    %16 = vector.broadcast %15 : vector<1x384xf32> to vector<16x384xf32>
    %17 = arith.addf %14, %16 : vector<16x384xf32>
    %18 = vector.extract_strided_slice %17 {offsets = [0, 0], sizes = [16, 128], strides = [1, 1]} : vector<16x384xf32> to vector<16x128xf32>
    %cst_13 = arith.constant 0.000000e+00 : f32
    %19 = vector.broadcast %cst_13 : f32 to vector<16x128xf32>
    %20 = arith.subf %19, %18 : vector<16x128xf32>
    %21 = math.exp %20 : vector<16x128xf32>
    %cst_14 = arith.constant 1.000000e+00 : f32
    %22 = vector.broadcast %cst_14 : f32 to vector<16x128xf32>
    %23 = arith.addf %22, %21 : vector<16x128xf32>
    %cst_15 = arith.constant 1.000000e+00 : f32
    %24 = vector.broadcast %cst_15 : f32 to vector<16x128xf32>
    %25 = arith.divf %24, %23 : vector<16x128xf32>
    %26 = vector.extract_strided_slice %17 {offsets = [0, 128], sizes = [16, 128], strides = [1, 1]} : vector<16x384xf32> to vector<16x128xf32>
    %27 = math.tanh %26 : vector<16x128xf32>
    %28 = vector.extract_strided_slice %17 {offsets = [0, 256], sizes = [16, 128], strides = [1, 1]} : vector<16x384xf32> to vector<16x128xf32>
    %cst_16 = arith.constant 0.000000e+00 : f32
    %29 = vector.broadcast %cst_16 : f32 to vector<16x128xf32>
    %30 = arith.subf %29, %28 : vector<16x128xf32>
    %31 = math.exp %30 : vector<16x128xf32>
    %cst_17 = arith.constant 1.000000e+00 : f32
    %32 = vector.broadcast %cst_17 : f32 to vector<16x128xf32>
    %33 = arith.addf %32, %31 : vector<16x128xf32>
    %cst_18 = arith.constant 1.000000e+00 : f32
    %34 = vector.broadcast %cst_18 : f32 to vector<16x128xf32>
    %35 = arith.divf %34, %33 : vector<16x128xf32>
    %36 = arith.mulf %25, %27 : vector<16x128xf32>
    %37 = math.tanh %36 : vector<16x128xf32>
    %38 = arith.mulf %35, %37 : vector<16x128xf32>
    %39 = arith.truncf %38 : vector<16x128xf32> to vector<16x128xbf16>
    %c0_19 = arith.constant 0 : index
    %c0_20 = arith.constant 0 : index
    %40 = vector.load %arg7[%c0_19, %c0_20] : memref<128x384xbf16, #tpu.memory_space<vmem>>, vector<128x384xbf16>
    %cst_21 = arith.constant dense<0.000000e+00> : vector<16x384xf32>
    %41 = tpu.matmul %39, %40, %cst_21 {dimension_numbers = #tpu.dot_dimension_numbers<[1], [0], [0], [1], [0, 0, 1, 1], [], []>} : vector<16x128xbf16>, vector<128x384xbf16>, vector<16x384xf32> -> vector<16x384xf32>
    %c0_22 = arith.constant 0 : index
    %c0_23 = arith.constant 0 : index
    %42 = vector.load %arg8[%c0_22, %c0_23] : memref<1x384xf32, #tpu.memory_space<vmem>>, vector<1x384xf32>
    %43 = vector.broadcast %42 : vector<1x384xf32> to vector<16x384xf32>
    %44 = arith.addf %41, %43 : vector<16x384xf32>
    %45 = vector.extract_strided_slice %44 {offsets = [0, 0], sizes = [16, 128], strides = [1, 1]} : vector<16x384xf32> to vector<16x128xf32>
    %cst_24 = arith.constant 0.000000e+00 : f32
    %46 = vector.broadcast %cst_24 : f32 to vector<16x128xf32>
    %47 = arith.subf %46, %45 : vector<16x128xf32>
    %48 = math.exp %47 : vector<16x128xf32>
    %cst_25 = arith.constant 1.000000e+00 : f32
    %49 = vector.broadcast %cst_25 : f32 to vector<16x128xf32>
    %50 = arith.addf %49, %48 : vector<16x128xf32>
    %cst_26 = arith.constant 1.000000e+00 : f32
    %51 = vector.broadcast %cst_26 : f32 to vector<16x128xf32>
    %52 = arith.divf %51, %50 : vector<16x128xf32>
    %53 = vector.extract_strided_slice %44 {offsets = [0, 128], sizes = [16, 128], strides = [1, 1]} : vector<16x384xf32> to vector<16x128xf32>
    %54 = math.tanh %53 : vector<16x128xf32>
    %55 = vector.extract_strided_slice %44 {offsets = [0, 256], sizes = [16, 128], strides = [1, 1]} : vector<16x384xf32> to vector<16x128xf32>
    %cst_27 = arith.constant 0.000000e+00 : f32
    %56 = vector.broadcast %cst_27 : f32 to vector<16x128xf32>
    %57 = arith.subf %56, %55 : vector<16x128xf32>
    %58 = math.exp %57 : vector<16x128xf32>
    %cst_28 = arith.constant 1.000000e+00 : f32
    %59 = vector.broadcast %cst_28 : f32 to vector<16x128xf32>
    %60 = arith.addf %59, %58 : vector<16x128xf32>
    %cst_29 = arith.constant 1.000000e+00 : f32
    %61 = vector.broadcast %cst_29 : f32 to vector<16x128xf32>
    %62 = arith.divf %61, %60 : vector<16x128xf32>
    %63 = arith.mulf %52, %54 : vector<16x128xf32>
    %64 = math.tanh %63 : vector<16x128xf32>
    %65 = arith.mulf %62, %64 : vector<16x128xf32>
    %66 = arith.truncf %65 : vector<16x128xf32> to vector<16x128xbf16>
    %c0_30 = arith.constant 0 : index
    %c0_31 = arith.constant 0 : index
    %67 = vector.load %arg9[%c0_30, %c0_31] : memref<128x128xbf16, #tpu.memory_space<vmem>>, vector<128x128xbf16>
    %cst_32 = arith.constant dense<0.000000e+00> : vector<16x128xf32>
    %68 = tpu.matmul %66, %67, %cst_32 {dimension_numbers = #tpu.dot_dimension_numbers<[1], [0], [0], [1], [0, 0, 1, 1], [], []>} : vector<16x128xbf16>, vector<128x128xbf16>, vector<16x128xf32> -> vector<16x128xf32>
    %c0_33 = arith.constant 0 : index
    %c0_34 = arith.constant 0 : index
    %69 = vector.load %arg10[%c0_33, %c0_34] : memref<1x128xf32, #tpu.memory_space<vmem>>, vector<1x128xf32>
    %70 = vector.broadcast %69 : vector<1x128xf32> to vector<16x128xf32>
    %71 = arith.addf %68, %70 : vector<16x128xf32>
    %c0_35 = arith.constant 0 : index
    %c0_36 = arith.constant 0 : index
    %72 = vector.load %arg11[%c0_35, %c0_36] : memref<16x128xf32, #tpu.memory_space<vmem>>, vector<16x128xf32>
    tpu.vector_store %arg11[%c0_35, %c0_36], %71 {strides = array<i32>} : memref<16x128xf32, #tpu.memory_space<vmem>>, vector<16x128xf32>,
    return
  }
  func.func @transform_0(%arg0: i32) -> (i32, i32) {
    %c0_i32 = arith.constant 0 : i32
    %c0_i32_0 = arith.constant 0 : i32
    return %arg0, %c0_i32 : i32, i32
  }
  func.func @transform_1(%arg0: i32) -> (i32, i32) {
    %c0_i32 = arith.constant 0 : i32
    %c0_i32_0 = arith.constant 0 : i32
    %c0_i32_1 = arith.constant 0 : i32
    return %c0_i32, %c0_i32_0 : i32, i32
  }
  func.func @transform_2(%arg0: i32) -> (i32, i32) {
    %c0_i32 = arith.constant 0 : i32
    %c0_i32_0 = arith.constant 0 : i32
    %c0_i32_1 = arith.constant 0 : i32
    return %c0_i32, %c0_i32_0 : i32, i32
  }
  func.func @transform_3(%arg0: i32) -> (i32, i32) {
    %c0_i32 = arith.constant 0 : i32
    %c0_i32_0 = arith.constant 0 : i32
    %c0_i32_1 = arith.constant 0 : i32
    return %c0_i32, %c0_i32_0 : i32, i32
  }
  func.func @transform_4(%arg0: i32) -> (i32, i32) {
    %c0_i32 = arith.constant 0 : i32
    %c0_i32_0 = arith.constant 0 : i32
    %c0_i32_1 = arith.constant 0 : i32
    return %c0_i32, %c0_i32_0 : i32, i32
  }
  func.func @transform_5(%arg0: i32) -> (i32, i32) {
    %c0_i32 = arith.constant 0 : i32
    %c0_i32_0 = arith.constant 0 : i32
    %c0_i32_1 = arith.constant 0 : i32
    return %c0_i32, %c0_i32_0 : i32, i32
  }
  func.func @transform_6(%arg0: i32) -> (i32, i32) {
    %c0_i32 = arith.constant 0 : i32
    %c0_i32_0 = arith.constant 0 : i32
    %c0_i32_1 = arith.constant 0 : i32
    return %c0_i32, %c0_i32_0 : i32, i32
  }
  func.func @transform_7(%arg0: i32) -> (i32, i32) {
    %c0_i32 = arith.constant 0 : i32
    %c0_i32_0 = arith.constant 0 : i32
    %c0_i32_1 = arith.constant 0 : i32
    return %c0_i32, %c0_i32_0 : i32, i32
  }
  func.func @transform_8(%arg0: i32) -> (i32, i32) {
    %c0_i32 = arith.constant 0 : i32
    %c0_i32_0 = arith.constant 0 : i32
    %c0_i32_1 = arith.constant 0 : i32
    return %c0_i32, %c0_i32_0 : i32, i32
  }
  func.func @transform_9(%arg0: i32) -> (i32, i32) {
    %c0_i32 = arith.constant 0 : i32
    %c0_i32_0 = arith.constant 0 : i32
    %c0_i32_1 = arith.constant 0 : i32
    return %c0_i32, %c0_i32_0 : i32, i32
  }
  func.func @transform_10(%arg0: i32) -> (i32, i32) {
    %c0_i32 = arith.constant 0 : i32
    %c0_i32_0 = arith.constant 0 : i32
    return %arg0, %c0_i32 : i32, i32
  }
}

</mosaic_0001>

<llo_original>
// kernel: tpu_custom_call.1
$region0: #{tpu_custom_call.1}
  #allocation0 [shape = 'u32[]', space=smem, size = 0x4, offset = 0x4, fixed_abs, tag = 'smem constant byte address 0x4 - core index']
  #allocation1 [shape = 'u32[72,128]{1,0:T(1,128)}', space=vmem, size = 0x9000, scoped, tag = 'internal scratch']
  %s0 = inlined_call_operand.hbm [shape: f32[32,40], index: 0, kind: input, shape index: {}]
  %s1 = inlined_call_operand.hbm [shape: bf16[40,128], index: 1, kind: input, shape index: {}]
  %s2 = inlined_call_operand.hbm [shape: f32[1,128], index: 2, kind: input, shape index: {}]
  %s3 = inlined_call_operand.hbm [shape: f32[1,128], index: 3, kind: input, shape index: {}]
  %s4 = inlined_call_operand.hbm [shape: bf16[128,384], index: 4, kind: input, shape index: {}]
  %s5 = inlined_call_operand.vmem [shape: f32[1,384], index: 5, kind: input, shape index: {}]
  %s6 = inlined_call_operand.hbm [shape: bf16[128,384], index: 6, kind: input, shape index: {}]
  %s7 = inlined_call_operand.vmem [shape: f32[1,384], index: 7, kind: input, shape index: {}]
  %s8 = inlined_call_operand.hbm [shape: bf16[128,128], index: 8, kind: input, shape index: {}]
  %s9 = inlined_call_operand.vmem [shape: f32[1,128], index: 9, kind: input, shape index: {}]
  %s10 = inlined_call_operand.hbm [shape: f32[32,128], index: 10, kind: output, shape index: {}]
  %s11 = sld [smem:[#allocation0]]
  $region101: #{tpu_custom_call.1} parent=0
    _
  %s13 = ssub.s32 1, %s11
  %s14 = scalar_select 0, %s13, %s11
  $region1: #{tpu_custom_call.1} parent=0
    #allocation2 [shape = 'u8[16384]{0}', space=vmem, size = 0x4000, scoped, tag = 'input window, operand 0']
    #allocation3 [shape = 's32[2]{0}', space=sflag, size = 0x8, scoped, tag = 'scoped memory for tpu_custom_call.1']
    #allocation4 [shape = 's32[2]{0}', space=sflag, size = 0x8, scoped, tag = 'scoped memory for tpu_custom_call.1']
    #allocation5 [shape = 'u8[10240]{0}', space=vmem, size = 0x2800, scoped, tag = 'input window, operand 1, single buffered']
    #allocation6 [shape = 's32[1]{0}', space=sflag, size = 0x4, scoped, tag = 'scoped memory for tpu_custom_call.1']
    #allocation7 [shape = 'u8[512]{0}', space=vmem, size = 0x400, scoped, tag = 'input window, operand 2, single buffered']
    #allocation8 [shape = 'u8[512]{0}', space=vmem, size = 0x400, scoped, tag = 'input window, operand 3, single buffered']
    #allocation9 [shape = 's32[1]{0}', space=sflag, size = 0x4, scoped, tag = 'scoped memory for tpu_custom_call.1']
    #allocation10 [shape = 'u8[98304]{0}', space=vmem, size = 0x18000, scoped, tag = 'input window, operand 4, single buffered']
    #allocation11 [shape = 'u8[98304]{0}', space=vmem, size = 0x18000, scoped, tag = 'input window, operand 6, single buffered']
    #allocation12 [shape = 's32[1]{0}', space=sflag, size = 0x4, scoped, tag = 'scoped memory for tpu_custom_call.1']
    #allocation13 [shape = 'u8[32768]{0}', space=vmem, size = 0x8000, scoped, tag = 'input window, operand 8, single buffered']
    #allocation14 [shape = 'u8[16384]{0}', space=vmem, size = 0x4000, scoped, tag = 'output window, operand 0']
    %15 = vsyncpa [#allocation3], 0
    %s16 = scalar_lea.sflag [#allocation3], 1
    %17 = vsyncpa %s16, 0
    %18 = vsyncpa [#allocation6], 0
    %19 = vsyncpa [#allocation9], 0
    %20 = vsyncpa [#allocation12], 0
    %21 = vsyncpa [#allocation4], 0
    %s22 = scalar_lea.sflag [#allocation4], 1
    %23 = vsyncpa %s22, 0
    loop: start=0, step=1, limit=4
    $region2: #{tpu_custom_call.1} parent=1 // loop_pre_header
      _
    $region3: #{tpu_custom_call.1} parent=1 // loop_header
      %s25 = sphi 0, %s29
      %p26 = scmp.ge.s32.totalorder %s25, 4
      %s35 = sphi 0, %s37
      %s38 = sphi 0, %s35
      %s39 = sphi 0, %s38
      %s55 = sphi 0, %s39
      %s59 = sphi 0, %s59
      %s61 = sphi 0, %s59
      %s62 = sphi 0, %s61
      %s76 = sphi 0, %s62
      %s80 = sphi 0, %s80
      %s82 = sphi 0, %s80
      %s83 = sphi 0, %s82
      %s97 = sphi 0, %s83
      %s101 = sphi 0, %s101
      %s103 = sphi 0, %s101
      %s104 = sphi 0, %s103
      %s118 = sphi 0, %s104
      %s122 = sphi 0, %s122
      %s124 = sphi 0, %s122
      %s125 = sphi 0, %s124
      %s139 = sphi 0, %s125
      %s143 = sphi 0, %s143
      %s145 = sphi 0, %s143
      %s146 = sphi 0, %s145
      %s160 = sphi 0, %s146
      %s164 = sphi 0, %s164
      %s166 = sphi 0, %s164
      %s167 = sphi 0, %s166
      %s181 = sphi 0, %s167
      %s185 = sphi 0, %s185
      %s187 = sphi 0, %s185
      %s188 = sphi 0, %s187
      %s202 = sphi 0, %s188
      %s206 = sphi 0, %s206
      %s208 = sphi 0, %s206
      %s209 = sphi 0, %s208
      %s223 = sphi 0, %s209
      %s227 = sphi 0, %s227
      %s229 = sphi 0, %s227
      %s230 = sphi 0, %s229
      %s244 = sphi 0, %s230
      %s250 = sphi 0, %s252
      %s253 = sphi 0, %s250
      %s254 = sphi 0, %s253
      %s270 = sphi 0, %s254
    $region4: #{tpu_custom_call.1} parent=1 // loop_header_branch
      %28 = sbr.rel (%p26) target = $region8
    $region5: #{tpu_custom_call.1} parent=1 // loop_body
      %s30 = ssub.s32 %s25, 1
      %s31 = ssub.s32 %s25, 2
      %s32 = sadd.s32 %s25, 1
      %s33 = ssub.s32 %s25, %s32
      %p34 = scmp.eq.s32.totalorder %s33, 0
      %s36 = sadd.s32 %s35, 1
      %s37 = scalar_select %p34, %s35, %s36
      %p40 = pneg %p34
      %p41 = scmp.eq.s32.totalorder %s25, 1
      %p42 = por %p40, %p41
      %p43 = scmp.ne.s32.totalorder %s35, %s38
      %p44 = scmp.eq.s32.totalorder %s25, 0
      %p45 = por %p43, %p44
      %p46 = scmp.ne.s32.totalorder %s35, %s38
      %p47 = scmp.eq.s32.totalorder %s30, 1
      %p48 = por %p46, %p47
      %p49 = scmp.ne.s32.totalorder %s38, %s39
      %p50 = scmp.eq.s32.totalorder %s30, 0
      %p51 = por %p49, %p50
      %p52 = scmp.ne.s32.totalorder %s38, %s39
      %p53 = scmp.eq.s32.totalorder %s31, 1
      %p54 = por %p52, %p53
      %p56 = scmp.ne.s32.totalorder %s39, %s55
      %p57 = scmp.eq.s32.totalorder %s31, 0
      %p58 = por %p56, %p57
      %s60 = sadd.s32 %s59, 1
      %p63 = scmp.eq.s32.totalorder %s25, 1
      %p64 = scmp.ne.s32.totalorder %s59, %s61
      %p65 = scmp.eq.s32.totalorder %s25, 0
      %p66 = por %p64, %p65
      %p67 = scmp.ne.s32.totalorder %s59, %s61
      %p68 = scmp.eq.s32.totalorder %s30, 1
      %p69 = por %p67, %p68
      %p70 = scmp.ne.s32.totalorder %s61, %s62
      %p71 = scmp.eq.s32.totalorder %s30, 0
      %p72 = por %p70, %p71
      %p73 = scmp.ne.s32.totalorder %s61, %s62
      %p74 = scmp.eq.s32.totalorder %s31, 1
      %p75 = por %p73, %p74
      %p77 = scmp.ne.s32.totalorder %s62, %s76
      %p78 = scmp.eq.s32.totalorder %s31, 0
      %p79 = por %p77, %p78
      %s81 = sadd.s32 %s80, 1
      %p84 = scmp.eq.s32.totalorder %s25, 1
      %p85 = scmp.ne.s32.totalorder %s80, %s82
      %p86 = scmp.eq.s32.totalorder %s25, 0
      %p87 = por %p85, %p86
      %p88 = scmp.ne.s32.totalorder %s80, %s82
      %p89 = scmp.eq.s32.totalorder %s30, 1
      %p90 = por %p88, %p89
      %p91 = scmp.ne.s32.totalorder %s82, %s83
      %p92 = scmp.eq.s32.totalorder %s30, 0
      %p93 = por %p91, %p92
      %p94 = scmp.ne.s32.totalorder %s82, %s83
      %p95 = scmp.eq.s32.totalorder %s31, 1
      %p96 = por %p94, %p95
      %p98 = scmp.ne.s32.totalorder %s83, %s97
      %p99 = scmp.eq.s32.totalorder %s31, 0
      %p100 = por %p98, %p99
      %s102 = sadd.s32 %s101, 1
      %p105 = scmp.eq.s32.totalorder %s25, 1
      %p106 = scmp.ne.s32.totalorder %s101, %s103
      %p107 = scmp.eq.s32.totalorder %s25, 0
      %p108 = por %p106, %p107
      %p109 = scmp.ne.s32.totalorder %s101, %s103
      %p110 = scmp.eq.s32.totalorder %s30, 1
      %p111 = por %p109, %p110
      %p112 = scmp.ne.s32.totalorder %s103, %s104
      %p113 = scmp.eq.s32.totalorder %s30, 0
      %p114 = por %p112, %p113
      %p115 = scmp.ne.s32.totalorder %s103, %s104
      %p116 = scmp.eq.s32.totalorder %s31, 1
      %p117 = por %p115, %p116
      %p119 = scmp.ne.s32.totalorder %s104, %s118
      %p120 = scmp.eq.s32.totalorder %s31, 0
      %p121 = por %p119, %p120
      %s123 = sadd.s32 %s122, 1
      %p126 = scmp.eq.s32.totalorder %s25, 1
      %p127 = scmp.ne.s32.totalorder %s122, %s124
      %p128 = scmp.eq.s32.totalorder %s25, 0
      %p129 = por %p127, %p128
      %p130 = scmp.ne.s32.totalorder %s122, %s124
      %p131 = scmp.eq.s32.totalorder %s30, 1
      %p132 = por %p130, %p131
      %p133 = scmp.ne.s32.totalorder %s124, %s125
      %p134 = scmp.eq.s32.totalorder %s30, 0
      %p135 = por %p133, %p134
      %p136 = scmp.ne.s32.totalorder %s124, %s125
      %p137 = scmp.eq.s32.totalorder %s31, 1
      %p138 = por %p136, %p137
      %p140 = scmp.ne.s32.totalorder %s125, %s139
      %p141 = scmp.eq.s32.totalorder %s31, 0
      %p142 = por %p140, %p141
      %s144 = sadd.s32 %s143, 1
      %p147 = scmp.eq.s32.totalorder %s25, 1
      %p148 = scmp.ne.s32.totalorder %s143, %s145
      %p149 = scmp.eq.s32.totalorder %s25, 0
      %p150 = por %p148, %p149
      %p151 = scmp.ne.s32.totalorder %s143, %s145
      %p152 = scmp.eq.s32.totalorder %s30, 1
      %p153 = por %p151, %p152
      %p154 = scmp.ne.s32.totalorder %s145, %s146
      %p155 = scmp.eq.s32.totalorder %s30, 0
      %p156 = por %p154, %p155
      %p157 = scmp.ne.s32.totalorder %s145, %s146
      %p158 = scmp.eq.s32.totalorder %s31, 1
      %p159 = por %p157, %p158
      %p161 = scmp.ne.s32.totalorder %s146, %s160
      %p162 = scmp.eq.s32.totalorder %s31, 0
      %p163 = por %p161, %p162
      %s165 = sadd.s32 %s164, 1
      %p168 = scmp.eq.s32.totalorder %s25, 1
      %p169 = scmp.ne.s32.totalorder %s164, %s166
      %p170 = scmp.eq.s32.totalorder %s25, 0
      %p171 = por %p169, %p170
      %p172 = scmp.ne.s32.totalorder %s164, %s166
      %p173 = scmp.eq.s32.totalorder %s30, 1
      %p174 = por %p172, %p173
      %p175 = scmp.ne.s32.totalorder %s166, %s167
      %p176 = scmp.eq.s32.totalorder %s30, 0
      %p177 = por %p175, %p176
      %p178 = scmp.ne.s32.totalorder %s166, %s167
      %p179 = scmp.eq.s32.totalorder %s31, 1
      %p180 = por %p178, %p179
      %p182 = scmp.ne.s32.totalorder %s167, %s181
      %p183 = scmp.eq.s32.totalorder %s31, 0
      %p184 = por %p182, %p183
      %s186 = sadd.s32 %s185, 1
      %p189 = scmp.eq.s32.totalorder %s25, 1
      %p190 = scmp.ne.s32.totalorder %s185, %s187
      %p191 = scmp.eq.s32.totalorder %s25, 0
      %p192 = por %p190, %p191
      %p193 = scmp.ne.s32.totalorder %s185, %s187
      %p194 = scmp.eq.s32.totalorder %s30, 1
      %p195 = por %p193, %p194
      %p196 = scmp.ne.s32.totalorder %s187, %s188
      %p197 = scmp.eq.s32.totalorder %s30, 0
      %p198 = por %p196, %p197
      %p199 = scmp.ne.s32.totalorder %s187, %s188
      %p200 = scmp.eq.s32.totalorder %s31, 1
      %p201 = por %p199, %p200
      %p203 = scmp.ne.s32.totalorder %s188, %s202
      %p204 = scmp.eq.s32.totalorder %s31, 0
      %p205 = por %p203, %p204
      %s207 = sadd.s32 %s206, 1
      %p210 = scmp.eq.s32.totalorder %s25, 1
      %p211 = scmp.ne.s32.totalorder %s206, %s208
      %p212 = scmp.eq.s32.totalorder %s25, 0
      %p213 = por %p211, %p212
      %p214 = scmp.ne.s32.totalorder %s206, %s208
      %p215 = scmp.eq.s32.totalorder %s30, 1
      %p216 = por %p214, %p215
      %p217 = scmp.ne.s32.totalorder %s208, %s209
      %p218 = scmp.eq.s32.totalorder %s30, 0
      %p219 = por %p217, %p218
      %p220 = scmp.ne.s32.totalorder %s208, %s209
      %p221 = scmp.eq.s32.totalorder %s31, 1
      %p222 = por %p220, %p221
      %p224 = scmp.ne.s32.totalorder %s209, %s223
      %p225 = scmp.eq.s32.totalorder %s31, 0
      %p226 = por %p224, %p225
      %s228 = sadd.s32 %s227, 1
      %p231 = scmp.eq.s32.totalorder %s25, 1
      %p232 = scmp.ne.s32.totalorder %s227, %s229
      %p233 = scmp.eq.s32.totalorder %s25, 0
      %p234 = por %p232, %p233
      %p235 = scmp.ne.s32.totalorder %s227, %s229
      %p236 = scmp.eq.s32.totalorder %s30, 1
      %p237 = por %p235, %p236
      %p238 = scmp.ne.s32.totalorder %s229, %s230
      %p239 = scmp.eq.s32.totalorder %s30, 0
      %p240 = por %p238, %p239
      %p241 = scmp.ne.s32.totalorder %s229, %s230
      %p242 = scmp.eq.s32.totalorder %s31, 1
      %p243 = por %p241, %p242
      %p245 = scmp.ne.s32.totalorder %s230, %s244
      %p246 = scmp.eq.s32.totalorder %s31, 0
      %p247 = por %p245, %p246
      %s248 = ssub.s32 %s25, %s32
      %p249 = scmp.eq.s32.totalorder %s248, 0
      %s251 = sadd.s32 %s250, 1
      %s252 = scalar_select %p249, %s250, %s251
      %p255 = pneg %p249
      %p256 = scmp.eq.s32.totalorder %s25, 1
      %p257 = por %p255, %p256
      %p258 = scmp.ne.s32.totalorder %s250, %s253
      %p259 = scmp.eq.s32.totalorder %s25, 0
      %p260 = por %p258, %p259
      %p261 = scmp.ne.s32.totalorder %s250, %s253
      %p262 = scmp.eq.s32.totalorder %s30, 1
      %p263 = por %p261, %p262
      %p264 = scmp.ne.s32.totalorder %s253, %s254
      %p265 = scmp.eq.s32.totalorder %s30, 0
      %p266 = por %p264, %p265
      %p267 = scmp.ne.s32.totalorder %s253, %s254
      %p268 = scmp.eq.s32.totalorder %s31, 1
      %p269 = por %p267, %p268
      %p271 = scmp.ne.s32.totalorder %s254, %s270
      %p272 = scmp.eq.s32.totalorder %s31, 0
      %p273 = por %p271, %p272
      %p274 = scmp.le.s32.totalorder 1, %s25
      %p275 = scmp.lt.s32.totalorder %s25, 3
      %p276 = pnand %p274, %p275
      %p277 = pneg %p276
      // Predicated region
      $region9: #{tpu_custom_call.1} parent=5 // pred_check
        _
      $region10: #{tpu_custom_call.1} parent=5 // pred_check_branch
        %279 = sbr.rel (%p276) target = $region12
      $region11: #{tpu_custom_call.1} parent=5 // pred_region
        %s280 = ssub.s32 %s25, 1
        // Predicated region
        $region13: #{tpu_custom_call.1} parent=11 // pred_check
          %p281 = pneg %p72
        $region14: #{tpu_custom_call.1} parent=11 // pred_check_branch
          %283 = sbr.rel (%p281) target = $region16
        $region15: #{tpu_custom_call.1} parent=11 // pred_region
          %285 = vsyncadd [#allocation6], 0
          %s286 = sshll.u32 %s1, 4
          %s287 = int_to_ptr.hbm [resolvable:$true] %s286
          %s288 = sshll.u32 [#allocation5], 4
          %s289 = int_to_ptr.vmem [resolvable:$true] %s288
          %294 = dma.hbm_to_vmem [thread:$0]  %s287, 320, %s289, [#allocation6], 64, 64, 4
        $region16: #{tpu_custom_call.1} parent=11 // pred_fallthru
          _
        // Predicated region
        $region17: #{tpu_custom_call.1} parent=11 // pred_check
          %p295 = pneg %p93
        $region18: #{tpu_custom_call.1} parent=11 // pred_check_branch
          %297 = sbr.rel (%p295) target = $region20
        $region19: #{tpu_custom_call.1} parent=11 // pred_region
          %299 = vsyncadd [#allocation6], 0
          %s301 = sshll.u32 %s2, 4
          %s302 = int_to_ptr.hbm [resolvable:$true] %s301
          %s303 = sshll.u32 [#allocation7], 4
          %s304 = int_to_ptr.vmem [resolvable:$true] %s303
          %306 = dma.hbm_to_vmem [thread:$0]  %s302, 16, %s304, [#allocation6]
        $region20: #{tpu_custom_call.1} parent=11 // pred_fallthru
          _
        // Predicated region
        $region21: #{tpu_custom_call.1} parent=11 // pred_check
          %p307 = pneg %p114
        $region22: #{tpu_custom_call.1} parent=11 // pred_check_branch
          %309 = sbr.rel (%p307) target = $region24
        $region23: #{tpu_custom_call.1} parent=11 // pred_region
          %311 = vsyncadd [#allocation9], 0
          %s313 = sshll.u32 %s3, 4
          %s314 = int_to_ptr.hbm [resolvable:$true] %s313
          %s315 = sshll.u32 [#allocation8], 4
          %s316 = int_to_ptr.vmem [resolvable:$true] %s315
          %318 = dma.hbm_to_vmem [thread:$0]  %s314, 16, %s316, [#allocation9]
        $region24: #{tpu_custom_call.1} parent=11 // pred_fallthru
          _
        // Predicated region
        $region25: #{tpu_custom_call.1} parent=11 // pred_check
          %p319 = pneg %p135
        $region26: #{tpu_custom_call.1} parent=11 // pred_check_branch
          %321 = sbr.rel (%p319) target = $region28
        $region27: #{tpu_custom_call.1} parent=11 // pred_region
          %323 = vsyncadd [#allocation9], 0
          %s324 = sshll.u32 %s4, 4
          %s325 = int_to_ptr.hbm [resolvable:$true] %s324
          %s326 = sshll.u32 [#allocation10], 4
          %s327 = int_to_ptr.vmem [resolvable:$true] %s326
          %332 = dma.hbm_to_vmem [thread:$0]  %s325, 3072, %s327, [#allocation9], 192, 192, 12
        $region28: #{tpu_custom_call.1} parent=11 // pred_fallthru
          _
        // Predicated region
        $region29: #{tpu_custom_call.1} parent=11 // pred_check
          %p333 = pneg %p156
        $region30: #{tpu_custom_call.1} parent=11 // pred_check_branch
          %335 = sbr.rel (%p333) target = $region32
        $region31: #{tpu_custom_call.1} parent=11 // pred_region
          _
        $region32: #{tpu_custom_call.1} parent=11 // pred_fallthru
          _
        // Predicated region
        $region33: #{tpu_custom_call.1} parent=11 // pred_check
          %p336 = pneg %p177
        $region34: #{tpu_custom_call.1} parent=11 // pred_check_branch
          %338 = sbr.rel (%p336) target = $region36
        $region35: #{tpu_custom_call.1} parent=11 // pred_region
          %340 = vsyncadd [#allocation12], 0
          %s341 = sshll.u32 %s6, 4
          %s342 = int_to_ptr.hbm [resolvable:$true] %s341
          %s343 = sshll.u32 [#allocation11], 4
          %s344 = int_to_ptr.vmem [resolvable:$true] %s343
          %349 = dma.hbm_to_vmem [thread:$0]  %s342, 3072, %s344, [#allocation12], 192, 192, 12
        $region36: #{tpu_custom_call.1} parent=11 // pred_fallthru
          _
        // Predicated region
        $region37: #{tpu_custom_call.1} parent=11 // pred_check
          %p350 = pneg %p198
        $region38: #{tpu_custom_call.1} parent=11 // pred_check_branch
          %352 = sbr.rel (%p350) target = $region40
        $region39: #{tpu_custom_call.1} parent=11 // pred_region
          _
        $region40: #{tpu_custom_call.1} parent=11 // pred_fallthru
          _
        // Predicated region
        $region41: #{tpu_custom_call.1} parent=11 // pred_check
          %p353 = pneg %p219
        $region42: #{tpu_custom_call.1} parent=11 // pred_check_branch
          %355 = sbr.rel (%p353) target = $region44
        $region43: #{tpu_custom_call.1} parent=11 // pred_region
          %357 = vsyncadd [#allocation12], 0
          %s358 = sshll.u32 %s8, 4
          %s359 = int_to_ptr.hbm [resolvable:$true] %s358
          %s360 = sshll.u32 [#allocation13], 4
          %s361 = int_to_ptr.vmem [resolvable:$true] %s360
          %366 = dma.hbm_to_vmem [thread:$0]  %s359, 1024, %s361, [#allocation12], 64, 64, 4
        $region44: #{tpu_custom_call.1} parent=11 // pred_fallthru
          _
        // Predicated region
        $region45: #{tpu_custom_call.1} parent=11 // pred_check
          %p367 = pneg %p240
        $region46: #{tpu_custom_call.1} parent=11 // pred_check_branch
          %369 = sbr.rel (%p367) target = $region48
        $region47: #{tpu_custom_call.1} parent=11 // pred_region
          _
        $region48: #{tpu_custom_call.1} parent=11 // pred_fallthru
          _
      $region12: #{tpu_custom_call.1} parent=5 // pred_fallthru
        _
      %p370 = scmp.lt.s32.totalorder %s25, 2
      // Predicated region
      $region49: #{tpu_custom_call.1} parent=5 // pred_check
        %p371 = pneg %p370
      $region50: #{tpu_custom_call.1} parent=5 // pred_check_branch
        %373 = sbr.rel (%p371) target = $region52
      $region51: #{tpu_custom_call.1} parent=5 // pred_region
        // Predicated region
        $region53: #{tpu_custom_call.1} parent=51 // pred_check
          %p374 = pneg %p45
        $region54: #{tpu_custom_call.1} parent=51 // pred_check_branch
          %376 = sbr.rel (%p374) target = $region56
        $region55: #{tpu_custom_call.1} parent=51 // pred_region
          %s377 = sand.u32 %s35, 1
          %s378 = scalar_lea.sflag [#allocation3], %s377
          %s379 = sand.u32 %s35, 1
          %s380 = smul.addr %s379, 16
          %s381 = scalar_lea.vmem [#allocation2], %s380
          %s382 = smul.u32 2, %s25
          %384 = vsyncadd %s378, 0
          %s385 = smul.addr %s382, 8
          %s386 = scalar_lea.hbm %s0, %s385
          %s387 = sshll.u32 %s386, 4
          %s388 = int_to_ptr.hbm [resolvable:$true] %s387
          %s389 = sshll.u32 %s381, 4
          %s390 = int_to_ptr.vmem [resolvable:$true] %s389
          %395 = dma.hbm_to_vmem [thread:$0]  %s388, 256, %s390, %s378, 128, 128, 8
        $region56: #{tpu_custom_call.1} parent=51 // pred_fallthru
          _
      $region52: #{tpu_custom_call.1} parent=5 // pred_fallthru
        _
      %p396 = scmp.le.s32.totalorder 1, %s25
      %p397 = scmp.lt.s32.totalorder %s25, 3
      %p398 = pnand %p396, %p397
      %p399 = pneg %p398
      // Predicated region
      $region57: #{tpu_custom_call.1} parent=5 // pred_check
        _
      $region58: #{tpu_custom_call.1} parent=5 // pred_check_branch
        %401 = sbr.rel (%p398) target = $region60
      $region59: #{tpu_custom_call.1} parent=5 // pred_region
        %s402 = ssub.s32 %s25, 1
        %s403 = sand.u32 %s38, 1
        %s404 = scalar_lea.sflag [#allocation3], %s403
        %s405 = sand.u32 %s38, 1
        %s406 = smul.addr %s405, 16
        %s407 = scalar_lea.vmem [#allocation2], %s406
        // Predicated region
        $region61: #{tpu_custom_call.1} parent=59 // pred_check
          %p408 = pneg %p51
        $region62: #{tpu_custom_call.1} parent=59 // pred_check_branch
          %410 = sbr.rel (%p408) target = $region64
        $region63: #{tpu_custom_call.1} parent=59 // pred_region
          %412 = dma.done %s404, 256
        $region64: #{tpu_custom_call.1} parent=59 // pred_fallthru
          _
        // Predicated region
        $region65: #{tpu_custom_call.1} parent=59 // pred_check
          %p413 = pneg %p72
        $region66: #{tpu_custom_call.1} parent=59 // pred_check_branch
          %415 = sbr.rel (%p413) target = $region68
        $region67: #{tpu_custom_call.1} parent=59 // pred_region
          %417 = dma.done [#allocation6], 320
        $region68: #{tpu_custom_call.1} parent=59 // pred_fallthru
          _
        // Predicated region
        $region69: #{tpu_custom_call.1} parent=59 // pred_check
          %p418 = pneg %p93
        $region70: #{tpu_custom_call.1} parent=59 // pred_check_branch
          %420 = sbr.rel (%p418) target = $region72
        $region71: #{tpu_custom_call.1} parent=59 // pred_region
          %422 = dma.done [#allocation6], 16
        $region72: #{tpu_custom_call.1} parent=59 // pred_fallthru
          _
        // Predicated region
        $region73: #{tpu_custom_call.1} parent=59 // pred_check
          %p423 = pneg %p114
        $region74: #{tpu_custom_call.1} parent=59 // pred_check_branch
          %425 = sbr.rel (%p423) target = $region76
        $region75: #{tpu_custom_call.1} parent=59 // pred_region
          %427 = dma.done [#allocation9], 16
        $region76: #{tpu_custom_call.1} parent=59 // pred_fallthru
          _
        // Predicated region
        $region77: #{tpu_custom_call.1} parent=59 // pred_check
          %p428 = pneg %p135
        $region78: #{tpu_custom_call.1} parent=59 // pred_check_branch
          %430 = sbr.rel (%p428) target = $region80
        $region79: #{tpu_custom_call.1} parent=59 // pred_region
          %432 = dma.done [#allocation9], 3072
        $region80: #{tpu_custom_call.1} parent=59 // pred_fallthru
          _
        // Predicated region
        $region81: #{tpu_custom_call.1} parent=59 // pred_check
          %p433 = pneg %p177
        $region82: #{tpu_custom_call.1} parent=59 // pred_check_branch
          %435 = sbr.rel (%p433) target = $region84
        $region83: #{tpu_custom_call.1} parent=59 // pred_region
          %437 = dma.done [#allocation12], 3072
        $region84: #{tpu_custom_call.1} parent=59 // pred_fallthru
          _
        // Predicated region
        $region85: #{tpu_custom_call.1} parent=59 // pred_check
          %p438 = pneg %p219
        $region86: #{tpu_custom_call.1} parent=59 // pred_check_branch
          %440 = sbr.rel (%p438) target = $region88
        $region87: #{tpu_custom_call.1} parent=59 // pred_region
          %442 = dma.done [#allocation12], 1024
        $region88: #{tpu_custom_call.1} parent=59 // pred_fallthru
          _
        %s443 = sand.u32 %s38, 1
        %s444 = scalar_lea.sflag [#allocation3], %s443
        %s445 = sand.u32 %s38, 1
        %s446 = smul.addr %s445, 16
        %s447 = scalar_lea.vmem [#allocation2], %s446
        %p448 = pneg %p51
        %p449 = pneg %p48
        %p450 = pneg %p72
        %p451 = pneg %p69
        %p452 = pneg %p93
        %p453 = pneg %p90
        %p454 = pneg %p114
        %p455 = pneg %p111
        %p456 = pneg %p135
        %p457 = pneg %p132
        %p458 = pneg %p156
        %p459 = pneg %p153
        %p460 = pneg %p177
        %p461 = pneg %p174
        %p462 = pneg %p198
        %p463 = pneg %p195
        %p464 = pneg %p219
        %p465 = pneg %p216
        %p466 = pneg %p240
        %p467 = pneg %p237
        %p468 = pneg %p266
        %p469 = pneg %p263
        %s470 = sand.u32 %s253, 1
        %s471 = scalar_lea.sflag [#allocation4], %s470
        %s472 = sand.u32 %s253, 1
        %s473 = smul.addr %s472, 16
        %s474 = scalar_lea.vmem [#allocation14], %s473
        %s475 = smul.u32 2, %s30
        %s476 = smul.u32 2, %s30
        %v478 = vld [vmem:[%s407] sm:$0xff]
        %v479 = vld [vmem:[%s407 + $0x8] sm:$0xff]
        %v480 = vpack.c.bf16 %v479, %v478
        %v481 = vld [vmem:[#allocation5] sm:$0xf]
        %v482 = vld [vmem:[#allocation5 + $0x4] sm:$0xf]
        %v483 = vld [vmem:[#allocation5 + $0x8] sm:$0xf]
        %v484 = vld [vmem:[#allocation5 + $0xc] sm:$0xf]
        %v485 = vld [vmem:[#allocation5 + $0x10] sm:$0xf]
        %v491 = vunpack.c.l.b16 %v481
        %v492 = vunpack.c.l.b16 %v482
        %v493 = vunpack.c.l.b16 %v483
        %v494 = vunpack.c.l.b16 %v484
        %v495 = vunpack.c.l.b16 %v485
        %v496 = vpack.c.b16 %v492, %v491
        %v497 = vpack.c.b16 %v494, %v493
        %v498 = vpack.c.b16 %v495, %v495
        %vm501 = vcmask 326656
        %v503 = vsel %vm501, %v480, 0
        %vm505 = vcmask 1043456
        %v507 = vsel %vm505, %v498, 0
        %509 = vmatpush.bf16.msra.mxu0 0
        %510 = vmatpush.bf16.msra.mxu0 0
        %511 = vmatpush.bf16.msra.mxu0 0
        %512 = vmatpush.bf16.msra.mxu0 0
        %513 = vmatpush.bf16.msra.mxu0 0
        %514 = vmatpush.bf16.msra.mxu0 %v507
        %515 = vmatpush.bf16.msra.mxu0 %v497
        %516 = vmatpush.bf16.msra.mxu0 %v496
        %517 = vmatmul.bf16.gmra.mxu0 %v503
        %v518 = vpop.f32.mrf.mxu0
        %v519 = vadd.f32 0.0, %v518
        %v520 = vpop.f32.mrf.mxu0
        %v521 = vadd.f32 0.0, %v520
        %522 = vdwg.mxu0
        %v523 = vld [vmem:[#allocation7] sm:$0x1]
        %v525 = vperm.slane %v523, 0
        %v527 = vmul.f32 %v519, %v525
        %v528 = vmul.f32 %v521, %v525
        %v529 = vld [vmem:[#allocation8] sm:$0x1]
        %v531 = vperm.slane %v529, 0
        %v533 = vadd.f32 %v527, %v531
        %v534 = vadd.f32 %v528, %v531
        %v535 = vmax.f32 %v533, 0.0
        %v536 = vmax.f32 %v534, 0.0
        %v537 = vpack.c.bf16 %v536, %v535
        %v538 = vld [vmem:[#allocation10] sm:$0xff]
        %v539 = vld [vmem:[#allocation10 + $0x8] sm:$0xf]
        %v540 = vld [vmem:[#allocation10 + $0xc] sm:$0xff]
        %v541 = vld [vmem:[#allocation10 + $0x14] sm:$0xf]
        %v542 = vld [vmem:[#allocation10 + $0x18] sm:$0xff]
        %v543 = vld [vmem:[#allocation10 + $0x20] sm:$0xf]
        %v544 = vld [vmem:[#allocation10 + $0x24] sm:$0xff]
        %v545 = vld [vmem:[#allocation10 + $0x2c] sm:$0xf]
        %v546 = vld [vmem:[#allocation10 + $0x30] sm:$0xff]
        %v547 = vld [vmem:[#allocation10 + $0x38] sm:$0xf]
        %v548 = vld [vmem:[#allocation10 + $0x3c] sm:$0xff]
        %v549 = vld [vmem:[#allocation10 + $0x44] sm:$0xf]
        %v550 = vld [vmem:[#allocation10 + $0x48] sm:$0xff]
        %v551 = vld [vmem:[#allocation10 + $0x50] sm:$0xf]
        %v552 = vld [vmem:[#allocation10 + $0x54] sm:$0xff]
        %v553 = vld [vmem:[#allocation10 + $0x5c] sm:$0xf]
        %v554 = vld [vmem:[#allocation10 + $0x60] sm:$0xff]
        %v555 = vld [vmem:[#allocation10 + $0x68] sm:$0xf]
        %v556 = vld [vmem:[#allocation10 + $0x6c] sm:$0xff]
        %v557 = vld [vmem:[#allocation10 + $0x74] sm:$0xf]
        %v558 = vld [vmem:[#allocation10 + $0x78] sm:$0xff]
        %v559 = vld [vmem:[#allocation10 + $0x80] sm:$0xf]
        %v560 = vld [vmem:[#allocation10 + $0x84] sm:$0xff]
        %v561 = vld [vmem:[#allocation10 + $0x8c] sm:$0xf]
        %v562 = vld [vmem:[#allocation10 + $0x90] sm:$0xff]
        %v563 = vld [vmem:[#allocation10 + $0x98] sm:$0xf]
        %v564 = vld [vmem:[#allocation10 + $0x9c] sm:$0xff]
        %v565 = vld [vmem:[#allocation10 + $0xa4] sm:$0xf]
        %v566 = vld [vmem:[#allocation10 + $0xa8] sm:$0xff]
        %v567 = vld [vmem:[#allocation10 + $0xb0] sm:$0xf]
        %v568 = vld [vmem:[#allocation10 + $0xb4] sm:$0xff]
        %v569 = vld [vmem:[#allocation10 + $0xbc] sm:$0xf]
        %v570 = vld [vmem:[%s5] sm:$0x7]
        %v572 = vperm.slane %v570, 0
        %v573 = vperm.slane %v570, 1
        %v574 = vperm.slane %v570, 2
        %v610 = vunpack.c.l.b16 %v538
        %v611 = vunpack.c.h.b16 %v538
        %v612 = vunpack.c.l.b16 %v539
        %v613 = vunpack.c.l.b16 %v540
        %v614 = vunpack.c.h.b16 %v540
        %v615 = vunpack.c.l.b16 %v541
        %v616 = vunpack.c.l.b16 %v542
        %v617 = vunpack.c.h.b16 %v542
        %v618 = vunpack.c.l.b16 %v543
        %v619 = vunpack.c.l.b16 %v544
        %v620 = vunpack.c.h.b16 %v544
        %v621 = vunpack.c.l.b16 %v545
        %v622 = vunpack.c.l.b16 %v546
        %v623 = vunpack.c.h.b16 %v546
        %v624 = vunpack.c.l.b16 %v547
        %v625 = vunpack.c.l.b16 %v548
        %v626 = vunpack.c.h.b16 %v548
        %v627 = vunpack.c.l.b16 %v549
        %v628 = vunpack.c.l.b16 %v550
        %v629 = vunpack.c.h.b16 %v550
        %v630 = vunpack.c.l.b16 %v551
        %v631 = vunpack.c.l.b16 %v552
        %v632 = vunpack.c.h.b16 %v552
        %v633 = vunpack.c.l.b16 %v553
        %v634 = vunpack.c.l.b16 %v554
        %v635 = vunpack.c.h.b16 %v554
        %v636 = vunpack.c.l.b16 %v555
        %v637 = vunpack.c.l.b16 %v556
        %v638 = vunpack.c.h.b16 %v556
        %v639 = vunpack.c.l.b16 %v557
        %v640 = vunpack.c.l.b16 %v558
        %v641 = vunpack.c.h.b16 %v558
        %v642 = vunpack.c.l.b16 %v559
        %v643 = vunpack.c.l.b16 %v560
        %v644 = vunpack.c.h.b16 %v560
        %v645 = vunpack.c.l.b16 %v561
        %v646 = vunpack.c.l.b16 %v562
        %v647 = vunpack.c.h.b16 %v562
        %v648 = vunpack.c.l.b16 %v563
        %v649 = vunpack.c.l.b16 %v564
        %v650 = vunpack.c.h.b16 %v564
        %v651 = vunpack.c.l.b16 %v565
        %v652 = vunpack.c.l.b16 %v566
        %v653 = vunpack.c.h.b16 %v566
        %v654 = vunpack.c.l.b16 %v567
        %v655 = vunpack.c.l.b16 %v568
        %v656 = vunpack.c.h.b16 %v568
        %v657 = vunpack.c.l.b16 %v569
        %v658 = vpack.c.b16 %v613, %v610
        %v659 = vpack.c.b16 %v614, %v611
        %v660 = vpack.c.b16 %v615, %v612
        %v661 = vpack.c.b16 %v619, %v616
        %v662 = vpack.c.b16 %v620, %v617
        %v663 = vpack.c.b16 %v621, %v618
        %v664 = vpack.c.b16 %v625, %v622
        %v665 = vpack.c.b16 %v626, %v623
        %v666 = vpack.c.b16 %v627, %v624
        %v667 = vpack.c.b16 %v631, %v628
        %v668 = vpack.c.b16 %v632, %v629
        %v669 = vpack.c.b16 %v633, %v630
        %v670 = vpack.c.b16 %v637, %v634
        %v671 = vpack.c.b16 %v638, %v635
        %v672 = vpack.c.b16 %v639, %v636
        %v673 = vpack.c.b16 %v643, %v640
        %v674 = vpack.c.b16 %v644, %v641
        %v675 = vpack.c.b16 %v645, %v642
        %v676 = vpack.c.b16 %v649, %v646
        %v677 = vpack.c.b16 %v650, %v647
        %v678 = vpack.c.b16 %v651, %v648
        %v679 = vpack.c.b16 %v655, %v652
        %v680 = vpack.c.b16 %v656, %v653
        %v681 = vpack.c.b16 %v657, %v654
        %706 = vmatpush.bf16.msra.mxu0 %v679
        %707 = vmatpush.bf16.msra.mxu0 %v676
        %708 = vmatpush.bf16.msra.mxu0 %v673
        %709 = vmatpush.bf16.msra.mxu0 %v670
        %710 = vmatpush.bf16.msra.mxu0 %v667
        %711 = vmatpush.bf16.msra.mxu0 %v664
        %712 = vmatpush.bf16.msra.mxu0 %v661
        %713 = vmatpush.bf16.msra.mxu0 %v658
        %714 = vmatmul.bf16.gmra.mxu0 %v537
        %v715 = vpop.f32.mrf.mxu0
        %v716 = vadd.f32 %v572, %v715
        %v717 = vpop.f32.mrf.mxu0
        %v718 = vadd.f32 %v572, %v717
        %719 = vdwg.mxu0
        %720 = vmatpush.bf16.msra.mxu0 %v680
        %721 = vmatpush.bf16.msra.mxu0 %v677
        %722 = vmatpush.bf16.msra.mxu0 %v674
        %723 = vmatpush.bf16.msra.mxu0 %v671
        %724 = vmatpush.bf16.msra.mxu0 %v668
        %725 = vmatpush.bf16.msra.mxu0 %v665
        %726 = vmatpush.bf16.msra.mxu0 %v662
        %727 = vmatpush.bf16.msra.mxu0 %v659
        %728 = vmatmul.bf16.gmra.mxu0 %v537
        %v729 = vpop.f32.mrf.mxu0
        %v730 = vadd.f32 %v573, %v729
        %v731 = vpop.f32.mrf.mxu0
        %v732 = vadd.f32 %v573, %v731
        %733 = vdwg.mxu0
        %734 = vmatpush.bf16.msra.mxu0 %v681
        %735 = vmatpush.bf16.msra.mxu0 %v678
        %736 = vmatpush.bf16.msra.mxu0 %v675
        %737 = vmatpush.bf16.msra.mxu0 %v672
        %738 = vmatpush.bf16.msra.mxu0 %v669
        %739 = vmatpush.bf16.msra.mxu0 %v666
        %740 = vmatpush.bf16.msra.mxu0 %v663
        %741 = vmatpush.bf16.msra.mxu0 %v660
        %742 = vmatmul.bf16.gmra.mxu0 %v537
        %v743 = vpop.f32.mrf.mxu0
        %v744 = vadd.f32 %v574, %v743
        %v745 = vpop.f32.mrf.mxu0
        %v746 = vadd.f32 %v574, %v745
        %747 = vdwg.mxu0
        %v748 = vsub.f32 0.0, %v716
        %v749 = vsub.f32 0.0, %v718
        %v750 = vmul.f32 %v748, 1.442695
        %v751 = vpow.pop %v750
        %v752 = vmul.f32 %v749, 1.442695
        %v753 = vpow.pop %v752
        %v754 = vadd.f32 %v751, 1.0
        %v755 = vadd.f32 %v753, 1.0
        %v756 = vrcp.pop %v754
        %v757 = vmul.f32 %v754, %v756
        %v758 = vsub.f32 1.0, %v757
        %v759 = vmul.f32 %v756, %v758
        %v760 = vadd.f32 %v756, %v759
        %vm761 = vweird.f32 %v754
        %vm762 = vweird.f32 %v756
        %vm763 = vmor %vm761, %vm762
        %v764 = vsel %vm763, %v756, %v760
        %v765 = vand.u32 2147483647, %v754
        %vm766 = vcmp.eq.f32.partialorder %v765, 8.507059e+37
        %v767 = vand.u32 %v754, 2147483648
        %v768 = vor.u32 1.1754944e-38, %v767
        %v769 = vsel %vm766, %v768, %v764
        %v770 = vmul.f32 1.0, %v769
        %v771 = vrcp.pop %v755
        %v772 = vmul.f32 %v755, %v771
        %v773 = vsub.f32 1.0, %v772
        %v774 = vmul.f32 %v771, %v773
        %v775 = vadd.f32 %v771, %v774
        %vm776 = vweird.f32 %v755
        %vm777 = vweird.f32 %v771
        %vm778 = vmor %vm776, %vm777
        %v779 = vsel %vm778, %v771, %v775
        %v780 = vand.u32 2147483647, %v755
        %vm781 = vcmp.eq.f32.partialorder %v780, 8.507059e+37
        %v782 = vand.u32 %v755, 2147483648
        %v783 = vor.u32 1.1754944e-38, %v782
        %v784 = vsel %vm781, %v783, %v779
        %v785 = vmul.f32 1.0, %v784
        %v786 = vtanh.pop %v730
        %v787 = vtanh.pop %v732
        %v788 = vsub.f32 0.0, %v744
        %v789 = vsub.f32 0.0, %v746
        %v790 = vmul.f32 %v788, 1.442695
        %v791 = vpow.pop %v790
        %v792 = vmul.f32 %v789, 1.442695
        %v793 = vpow.pop %v792
        %v794 = vadd.f32 %v791, 1.0
        %v795 = vadd.f32 %v793, 1.0
        %v796 = vrcp.pop %v794
        %v797 = vmul.f32 %v794, %v796
        %v798 = vsub.f32 1.0, %v797
        %v799 = vmul.f32 %v796, %v798
        %v800 = vadd.f32 %v796, %v799
        %vm801 = vweird.f32 %v794
        %vm802 = vweird.f32 %v796
        %vm803 = vmor %vm801, %vm802
        %v804 = vsel %vm803, %v796, %v800
        %v805 = vand.u32 2147483647, %v794
        %vm806 = vcmp.eq.f32.partialorder %v805, 8.507059e+37
        %v807 = vand.u32 %v794, 2147483648
        %v808 = vor.u32 1.1754944e-38, %v807
        %v809 = vsel %vm806, %v808, %v804
        %v810 = vmul.f32 1.0, %v809
        %v811 = vrcp.pop %v795
        %v812 = vmul.f32 %v795, %v811
        %v813 = vsub.f32 1.0, %v812
        %v814 = vmul.f32 %v811, %v813
        %v815 = vadd.f32 %v811, %v814
        %vm816 = vweird.f32 %v795
        %vm817 = vweird.f32 %v811
        %vm818 = vmor %vm816, %vm817
        %v819 = vsel %vm818, %v811, %v815
        %v820 = vand.u32 2147483647, %v795
        %vm821 = vcmp.eq.f32.partialorder %v820, 8.507059e+37
        %v822 = vand.u32 %v795, 2147483648
        %v823 = vor.u32 1.1754944e-38, %v822
        %v824 = vsel %vm821, %v823, %v819
        %v825 = vmul.f32 1.0, %v824
        %v826 = vmul.f32 %v770, %v786
        %v827 = vmul.f32 %v785, %v787
        %v828 = vtanh.pop %v826
        %v829 = vtanh.pop %v827
        %v830 = vmul.f32 %v810, %v828
        %v831 = vmul.f32 %v825, %v829
        %v832 = vpack.c.bf16 %v831, %v830
        %v833 = vld [vmem:[#allocation11] sm:$0xff]
        %v834 = vld [vmem:[#allocation11 + $0x8] sm:$0xf]
        %v835 = vld [vmem:[#allocation11 + $0xc] sm:$0xff]
        %v836 = vld [vmem:[#allocation11 + $0x14] sm:$0xf]
        %v837 = vld [vmem:[#allocation11 + $0x18] sm:$0xff]
        %v838 = vld [vmem:[#allocation11 + $0x20] sm:$0xf]
        %v839 = vld [vmem:[#allocation11 + $0x24] sm:$0xff]
        %v840 = vld [vmem:[#allocation11 + $0x2c] sm:$0xf]
        %v841 = vld [vmem:[#allocation11 + $0x30] sm:$0xff]
        %v842 = vld [vmem:[#allocation11 + $0x38] sm:$0xf]
        %v843 = vld [vmem:[#allocation11 + $0x3c] sm:$0xff]
        %v844 = vld [vmem:[#allocation11 + $0x44] sm:$0xf]
        %v845 = vld [vmem:[#allocation11 + $0x48] sm:$0xff]
        %v846 = vld [vmem:[#allocation11 + $0x50] sm:$0xf]
        %v847 = vld [vmem:[#allocation11 + $0x54] sm:$0xff]
        %v848 = vld [vmem:[#allocation11 + $0x5c] sm:$0xf]
        %v849 = vld [vmem:[#allocation11 + $0x60] sm:$0xff]
        %v850 = vld [vmem:[#allocation11 + $0x68] sm:$0xf]
        %v851 = vld [vmem:[#allocation11 + $0x6c] sm:$0xff]
        %v852 = vld [vmem:[#allocation11 + $0x74] sm:$0xf]
        %v853 = vld [vmem:[#allocation11 + $0x78] sm:$0xff]
        %v854 = vld [vmem:[#allocation11 + $0x80] sm:$0xf]
        %v855 = vld [vmem:[#allocation11 + $0x84] sm:$0xff]
        %v856 = vld [vmem:[#allocation11 + $0x8c] sm:$0xf]
        %v857 = vld [vmem:[#allocation11 + $0x90] sm:$0xff]
        %v858 = vld [vmem:[#allocation11 + $0x98] sm:$0xf]
        %v859 = vld [vmem:[#allocation11 + $0x9c] sm:$0xff]
        %v860 = vld [vmem:[#allocation11 + $0xa4] sm:$0xf]
        %v861 = vld [vmem:[#allocation11 + $0xa8] sm:$0xff]
        %v862 = vld [vmem:[#allocation11 + $0xb0] sm:$0xf]
        %v863 = vld [vmem:[#allocation11 + $0xb4] sm:$0xff]
        %v864 = vld [vmem:[#allocation11 + $0xbc] sm:$0xf]
        %v865 = vld [vmem:[%s7] sm:$0x7]
        %v867 = vperm.slane %v865, 0
        %v868 = vperm.slane %v865, 1
        %v869 = vperm.slane %v865, 2
        %v905 = vunpack.c.l.b16 %v833
        %v906 = vunpack.c.h.b16 %v833
        %v907 = vunpack.c.l.b16 %v834
        %v908 = vunpack.c.l.b16 %v835
        %v909 = vunpack.c.h.b16 %v835
        %v910 = vunpack.c.l.b16 %v836
        %v911 = vunpack.c.l.b16 %v837
        %v912 = vunpack.c.h.b16 %v837
        %v913 = vunpack.c.l.b16 %v838
        %v914 = vunpack.c.l.b16 %v839
        %v915 = vunpack.c.h.b16 %v839
        %v916 = vunpack.c.l.b16 %v840
        %v917 = vunpack.c.l.b16 %v841
        %v918 = vunpack.c.h.b16 %v841
        %v919 = vunpack.c.l.b16 %v842
        %v920 = vunpack.c.l.b16 %v843
        %v921 = vunpack.c.h.b16 %v843
        %v922 = vunpack.c.l.b16 %v844
        %v923 = vunpack.c.l.b16 %v845
        %v924 = vunpack.c.h.b16 %v845
        %v925 = vunpack.c.l.b16 %v846
        %v926 = vunpack.c.l.b16 %v847
        %v927 = vunpack.c.h.b16 %v847
        %v928 = vunpack.c.l.b16 %v848
        %v929 = vunpack.c.l.b16 %v849
        %v930 = vunpack.c.h.b16 %v849
        %v931 = vunpack.c.l.b16 %v850
        %v932 = vunpack.c.l.b16 %v851
        %v933 = vunpack.c.h.b16 %v851
        %v934 = vunpack.c.l.b16 %v852
        %v935 = vunpack.c.l.b16 %v853
        %v936 = vunpack.c.h.b16 %v853
        %v937 = vunpack.c.l.b16 %v854
        %v938 = vunpack.c.l.b16 %v855
        %v939 = vunpack.c.h.b16 %v855
        %v940 = vunpack.c.l.b16 %v856
        %v941 = vunpack.c.l.b16 %v857
        %v942 = vunpack.c.h.b16 %v857
        %v943 = vunpack.c.l.b16 %v858
        %v944 = vunpack.c.l.b16 %v859
        %v945 = vunpack.c.h.b16 %v859
        %v946 = vunpack.c.l.b16 %v860
        %v947 = vunpack.c.l.b16 %v861
        %v948 = vunpack.c.h.b16 %v861
        %v949 = vunpack.c.l.b16 %v862
        %v950 = vunpack.c.l.b16 %v863
        %v951 = vunpack.c.h.b16 %v863
        %v952 = vunpack.c.l.b16 %v864
        %v953 = vpack.c.b16 %v908, %v905
        %v954 = vpack.c.b16 %v909, %v906
        %v955 = vpack.c.b16 %v910, %v907
        %v956 = vpack.c.b16 %v914, %v911
        %v957 = vpack.c.b16 %v915, %v912
        %v958 = vpack.c.b16 %v916, %v913
        %v959 = vpack.c.b16 %v920, %v917
        %v960 = vpack.c.b16 %v921, %v918
        %v961 = vpack.c.b16 %v922, %v919
        %v962 = vpack.c.b16 %v926, %v923
        %v963 = vpack.c.b16 %v927, %v924
        %v964 = vpack.c.b16 %v928, %v925
        %v965 = vpack.c.b16 %v932, %v929
        %v966 = vpack.c.b16 %v933, %v930
        %v967 = vpack.c.b16 %v934, %v931
        %v968 = vpack.c.b16 %v938, %v935
        %v969 = vpack.c.b16 %v939, %v936
        %v970 = vpack.c.b16 %v940, %v937
        %v971 = vpack.c.b16 %v944, %v941
        %v972 = vpack.c.b16 %v945, %v942
        %v973 = vpack.c.b16 %v946, %v943
        %v974 = vpack.c.b16 %v950, %v947
        %v975 = vpack.c.b16 %v951, %v948
        %v976 = vpack.c.b16 %v952, %v949
        %1001 = vmatpush.bf16.msra.mxu0 %v974
        %1002 = vmatpush.bf16.msra.mxu0 %v971
        %1003 = vmatpush.bf16.msra.mxu0 %v968
        %1004 = vmatpush.bf16.msra.mxu0 %v965
        %1005 = vmatpush.bf16.msra.mxu0 %v962
        %1006 = vmatpush.bf16.msra.mxu0 %v959
        %1007 = vmatpush.bf16.msra.mxu0 %v956
        %1008 = vmatpush.bf16.msra.mxu0 %v953
        %1009 = vmatmul.bf16.gmra.mxu0 %v832
        %v1010 = vpop.f32.mrf.mxu0
        %v1011 = vadd.f32 %v867, %v1010
        %v1012 = vpop.f32.mrf.mxu0
        %v1013 = vadd.f32 %v867, %v1012
        %1014 = vdwg.mxu0
        %1015 = vmatpush.bf16.msra.mxu0 %v975
        %1016 = vmatpush.bf16.msra.mxu0 %v972
        %1017 = vmatpush.bf16.msra.mxu0 %v969
        %1018 = vmatpush.bf16.msra.mxu0 %v966
        %1019 = vmatpush.bf16.msra.mxu0 %v963
        %1020 = vmatpush.bf16.msra.mxu0 %v960
        %1021 = vmatpush.bf16.msra.mxu0 %v957
        %1022 = vmatpush.bf16.msra.mxu0 %v954
        %1023 = vmatmul.bf16.gmra.mxu0 %v832
        %v1024 = vpop.f32.mrf.mxu0
        %v1025 = vadd.f32 %v868, %v1024
        %v1026 = vpop.f32.mrf.mxu0
        %v1027 = vadd.f32 %v868, %v1026
        %1028 = vdwg.mxu0
        %1029 = vmatpush.bf16.msra.mxu0 %v976
        %1030 = vmatpush.bf16.msra.mxu0 %v973
        %1031 = vmatpush.bf16.msra.mxu0 %v970
        %1032 = vmatpush.bf16.msra.mxu0 %v967
        %1033 = vmatpush.bf16.msra.mxu0 %v964
        %1034 = vmatpush.bf16.msra.mxu0 %v961
        %1035 = vmatpush.bf16.msra.mxu0 %v958
        %1036 = vmatpush.bf16.msra.mxu0 %v955
        %1037 = vmatmul.bf16.gmra.mxu0 %v832
        %v1038 = vpop.f32.mrf.mxu0
        %v1039 = vadd.f32 %v869, %v1038
        %v1040 = vpop.f32.mrf.mxu0
        %v1041 = vadd.f32 %v869, %v1040
        %1042 = vdwg.mxu0
        %v1043 = vsub.f32 0.0, %v1011
        %v1044 = vsub.f32 0.0, %v1013
        %v1045 = vmul.f32 %v1043, 1.442695
        %v1046 = vpow.pop %v1045
        %v1047 = vmul.f32 %v1044, 1.442695
        %v1048 = vpow.pop %v1047
        %v1049 = vadd.f32 %v1046, 1.0
        %v1050 = vadd.f32 %v1048, 1.0
        %v1051 = vrcp.pop %v1049
        %v1052 = vmul.f32 %v1049, %v1051
        %v1053 = vsub.f32 1.0, %v1052
        %v1054 = vmul.f32 %v1051, %v1053
        %v1055 = vadd.f32 %v1051, %v1054
        %vm1056 = vweird.f32 %v1049
        %vm1057 = vweird.f32 %v1051
        %vm1058 = vmor %vm1056, %vm1057
        %v1059 = vsel %vm1058, %v1051, %v1055
        %v1060 = vand.u32 2147483647, %v1049
        %vm1061 = vcmp.eq.f32.partialorder %v1060, 8.507059e+37
        %v1062 = vand.u32 %v1049, 2147483648
        %v1063 = vor.u32 1.1754944e-38, %v1062
        %v1064 = vsel %vm1061, %v1063, %v1059
        %v1065 = vmul.f32 1.0, %v1064
        %v1066 = vrcp.pop %v1050
        %v1067 = vmul.f32 %v1050, %v1066
        %v1068 = vsub.f32 1.0, %v1067
        %v1069 = vmul.f32 %v1066, %v1068
        %v1070 = vadd.f32 %v1066, %v1069
        %vm1071 = vweird.f32 %v1050
        %vm1072 = vweird.f32 %v1066
        %vm1073 = vmor %vm1071, %vm1072
        %v1074 = vsel %vm1073, %v1066, %v1070
        %v1075 = vand.u32 2147483647, %v1050
        %vm1076 = vcmp.eq.f32.partialorder %v1075, 8.507059e+37
        %v1077 = vand.u32 %v1050, 2147483648
        %v1078 = vor.u32 1.1754944e-38, %v1077
        %v1079 = vsel %vm1076, %v1078, %v1074
        %v1080 = vmul.f32 1.0, %v1079
        %v1081 = vtanh.pop %v1025
        %v1082 = vtanh.pop %v1027
        %v1083 = vsub.f32 0.0, %v1039
        %v1084 = vsub.f32 0.0, %v1041
        %v1085 = vmul.f32 %v1083, 1.442695
        %v1086 = vpow.pop %v1085
        %v1087 = vmul.f32 %v1084, 1.442695
        %v1088 = vpow.pop %v1087
        %v1089 = vadd.f32 %v1086, 1.0
        %v1090 = vadd.f32 %v1088, 1.0
        %v1091 = vrcp.pop %v1089
        %v1092 = vmul.f32 %v1089, %v1091
        %v1093 = vsub.f32 1.0, %v1092
        %v1094 = vmul.f32 %v1091, %v1093
        %v1095 = vadd.f32 %v1091, %v1094
        %vm1096 = vweird.f32 %v1089
        %vm1097 = vweird.f32 %v1091
        %vm1098 = vmor %vm1096, %vm1097
        %v1099 = vsel %vm1098, %v1091, %v1095
        %v1100 = vand.u32 2147483647, %v1089
        %vm1101 = vcmp.eq.f32.partialorder %v1100, 8.507059e+37
        %v1102 = vand.u32 %v1089, 2147483648
        %v1103 = vor.u32 1.1754944e-38, %v1102
        %v1104 = vsel %vm1101, %v1103, %v1099
        %v1105 = vmul.f32 1.0, %v1104
        %v1106 = vrcp.pop %v1090
        %v1107 = vmul.f32 %v1090, %v1106
        %v1108 = vsub.f32 1.0, %v1107
        %v1109 = vmul.f32 %v1106, %v1108
        %v1110 = vadd.f32 %v1106, %v1109
        %vm1111 = vweird.f32 %v1090
        %vm1112 = vweird.f32 %v1106
        %vm1113 = vmor %vm1111, %vm1112
        %v1114 = vsel %vm1113, %v1106, %v1110
        %v1115 = vand.u32 2147483647, %v1090
        %vm1116 = vcmp.eq.f32.partialorder %v1115, 8.507059e+37
        %v1117 = vand.u32 %v1090, 2147483648
        %v1118 = vor.u32 1.1754944e-38, %v1117
        %v1119 = vsel %vm1116, %v1118, %v1114
        %v1120 = vmul.f32 1.0, %v1119
        %v1121 = vmul.f32 %v1065, %v1081
        %v1122 = vmul.f32 %v1080, %v1082
        %v1123 = vtanh.pop %v1121
        %v1124 = vtanh.pop %v1122
        %v1125 = vmul.f32 %v1105, %v1123
        %v1126 = vmul.f32 %v1120, %v1124
        %v1127 = vpack.c.bf16 %v1126, %v1125
        %v1128 = vld [vmem:[#allocation13] sm:$0xf]
        %v1129 = vld [vmem:[#allocation13 + $0x4] sm:$0xf]
        %v1130 = vld [vmem:[#allocation13 + $0x8] sm:$0xf]
        %v1131 = vld [vmem:[#allocation13 + $0xc] sm:$0xf]
        %v1132 = vld [vmem:[#allocation13 + $0x10] sm:$0xf]
        %v1133 = vld [vmem:[#allocation13 + $0x14] sm:$0xf]
        %v1134 = vld [vmem:[#allocation13 + $0x18] sm:$0xf]
        %v1135 = vld [vmem:[#allocation13 + $0x1c] sm:$0xf]
        %v1136 = vld [vmem:[#allocation13 + $0x20] sm:$0xf]
        %v1137 = vld [vmem:[#allocation13 + $0x24] sm:$0xf]
        %v1138 = vld [vmem:[#allocation13 + $0x28] sm:$0xf]
        %v1139 = vld [vmem:[#allocation13 + $0x2c] sm:$0xf]
        %v1140 = vld [vmem:[#allocation13 + $0x30] sm:$0xf]
        %v1141 = vld [vmem:[#allocation13 + $0x34] sm:$0xf]
        %v1142 = vld [vmem:[#allocation13 + $0x38] sm:$0xf]
        %v1143 = vld [vmem:[#allocation13 + $0x3c] sm:$0xf]
        %v1144 = vld [vmem:[%s9] sm:$0x1]
        %v1146 = vperm.slane %v1144, 0
        %v1164 = vunpack.c.l.b16 %v1128
        %v1165 = vunpack.c.l.b16 %v1129
        %v1166 = vunpack.c.l.b16 %v1130
        %v1167 = vunpack.c.l.b16 %v1131
        %v1168 = vunpack.c.l.b16 %v1132
        %v1169 = vunpack.c.l.b16 %v1133
        %v1170 = vunpack.c.l.b16 %v1134
        %v1171 = vunpack.c.l.b16 %v1135
        %v1172 = vunpack.c.l.b16 %v1136
        %v1173 = vunpack.c.l.b16 %v1137
        %v1174 = vunpack.c.l.b16 %v1138
        %v1175 = vunpack.c.l.b16 %v1139
        %v1176 = vunpack.c.l.b16 %v1140
        %v1177 = vunpack.c.l.b16 %v1141
        %v1178 = vunpack.c.l.b16 %v1142
        %v1179 = vunpack.c.l.b16 %v1143
        %v1180 = vpack.c.b16 %v1165, %v1164
        %v1181 = vpack.c.b16 %v1167, %v1166
        %v1182 = vpack.c.b16 %v1169, %v1168
        %v1183 = vpack.c.b16 %v1171, %v1170
        %v1184 = vpack.c.b16 %v1173, %v1172
        %v1185 = vpack.c.b16 %v1175, %v1174
        %v1186 = vpack.c.b16 %v1177, %v1176
        %v1187 = vpack.c.b16 %v1179, %v1178
        %1196 = vmatpush.bf16.msra.mxu0 %v1187
        %1197 = vmatpush.bf16.msra.mxu0 %v1186
        %1198 = vmatpush.bf16.msra.mxu0 %v1185
        %1199 = vmatpush.bf16.msra.mxu0 %v1184
        %1200 = vmatpush.bf16.msra.mxu0 %v1183
        %1201 = vmatpush.bf16.msra.mxu0 %v1182
        %1202 = vmatpush.bf16.msra.mxu0 %v1181
        %1203 = vmatpush.bf16.msra.mxu0 %v1180
        %1204 = vmatmul.bf16.gmra.mxu0 %v1127
        %v1205 = vpop.f32.mrf.mxu0
        %v1206 = vadd.f32 %v1146, %v1205
        %v1207 = vpop.f32.mrf.mxu0
        %v1208 = vadd.f32 %v1146, %v1207
        %1209 = vdwg.mxu0
        %1210 = vst [vmem:[%s474] sm:$0xff] %v1206
        %1211 = vst [vmem:[%s474 + $0x8] sm:$0xff] %v1208
        %s1212 = sand.u32 %s253, 1
        %s1213 = scalar_lea.sflag [#allocation4], %s1212
        %s1214 = sand.u32 %s253, 1
        %s1215 = smul.addr %s1214, 16
        %s1216 = scalar_lea.vmem [#allocation14], %s1215
        // Predicated region
        $region89: #{tpu_custom_call.1} parent=59 // pred_check
          %p1217 = pneg %p263
        $region90: #{tpu_custom_call.1} parent=59 // pred_check_branch
          %1219 = sbr.rel (%p1217) target = $region92
        $region91: #{tpu_custom_call.1} parent=59 // pred_region
          %s1220 = smul.u32 2, %s30
          %1222 = vsyncadd %s1213, 0
          %s1223 = smul.addr %s1220, 8
          %s1224 = scalar_lea.hbm %s10, %s1223
          %s1225 = sshll.u32 %s1216, 4
          %s1226 = int_to_ptr.vmem [resolvable:$true] %s1225
          %s1227 = sshll.u32 %s1224, 4
          %s1228 = int_to_ptr.hbm [resolvable:$true] %s1227
          %1233 = dma.vmem_to_hbm [thread:$0]  %s1226, 256, %s1228, %s1213, 128, 128, 8
        $region92: #{tpu_custom_call.1} parent=59 // pred_fallthru
          _
      $region60: #{tpu_custom_call.1} parent=5 // pred_fallthru
        _
      %p1234 = scmp.le.s32.totalorder 2, %s25
      // Predicated region
      $region93: #{tpu_custom_call.1} parent=5 // pred_check
        %p1235 = pneg %p1234
      $region94: #{tpu_custom_call.1} parent=5 // pred_check_branch
        %1237 = sbr.rel (%p1235) target = $region96
      $region95: #{tpu_custom_call.1} parent=5 // pred_region
        %s1238 = ssub.s32 %s25, 2
        // Predicated region
        $region97: #{tpu_custom_call.1} parent=95 // pred_check
          %p1239 = pneg %p269
        $region98: #{tpu_custom_call.1} parent=95 // pred_check_branch
          %1241 = sbr.rel (%p1239) target = $region100
        $region99: #{tpu_custom_call.1} parent=95 // pred_region
          %s1242 = sand.u32 %s254, 1
          %s1243 = scalar_lea.sflag [#allocation4], %s1242
          %s1244 = sand.u32 %s254, 1
          %s1245 = smul.addr %s1244, 16
          %s1246 = scalar_lea.vmem [#allocation14], %s1245
          %1248 = dma.done %s1243, 256
        $region100: #{tpu_custom_call.1} parent=95 // pred_fallthru
          _
      $region96: #{tpu_custom_call.1} parent=5 // pred_fallthru
        _
    $region6: #{tpu_custom_call.1} parent=1 // loop_footer
      %s29 = sadd.s32 1, %s25
    $region7: #{tpu_custom_call.1} parent=1 // loop_footer_branch
      %24 = sbr.rel target = $region3
    $region8: #{tpu_custom_call.1} parent=1 // loop_exit
      _
    %1249 = vsyncpa [#allocation3], 1
    %s1250 = scalar_lea.sflag [#allocation3], 1
    %1251 = vsyncpa %s1250, 1
    %1252 = vsyncpa [#allocation6], 1
    %1253 = vsyncpa [#allocation9], 1
    %1254 = vsyncpa [#allocation12], 1
    %1255 = vsyncpa [#allocation4], 1
    %s1256 = scalar_lea.sflag [#allocation4], 1
    %1257 = vsyncpa %s1256, 1

</llo_original>
